<compile_context>
chip_gen: v6e
topology: v6e:2x2x1
jax: 0.10.0
libtpu: 0.0.40
codegen_flags: <defaults>
</compile_context>

<pallas_src>
import jax
import jax.numpy as jnp
from jax.experimental import pallas as pl
from jax.experimental.pallas import tpu as pltpu

LANE = 128


def _round_up(x, m):
    return (x + m - 1) // m * m


def cbow_kernel(idx_ref, emb_hbm, wt_ref, b_ref,
                logits_ref, m_ref, l_ref,
                rows, sems):
    """One vocab tile: gather C rows -> mean -> logits tile -> softmax stats.

    idx_ref   : SMEM (C,)      int32  scalar-prefetched context token ids
    emb_hbm   : HBM  (V, Dp)   f32    embedding table (memory_space=ANY)
    wt_ref    : VMEM (Dp, TV)  bf16   transposed linear-weight tile
    b_ref     : VMEM (1, TV)   f32    bias tile (-1e30 in padded vocab lanes)
    logits_ref: VMEM (1, TV)   f32    un-normalized logits tile (output)
    m_ref     : VMEM (1, 128)  f32    per-tile max, lane-broadcast (output)
    l_ref     : VMEM (1, 128)  f32    per-tile sum-exp, lane-broadcast (output)
    rows      : VMEM (C, Dp)   f32    gathered embedding rows (scratch)
    sems      : DMA semaphores (C,)
    """
    C = idx_ref.shape[0]
    V = emb_hbm.shape[0]

    # 1) Gather the C context rows HBM -> VMEM (dynamic row index, clamped so
    #    an out-of-range token contributes a valid row instead of OOB bytes).
    copies = []
    for i in range(C):
        row = jnp.clip(idx_ref[i], 0, V - 1)
        cp = pltpu.make_async_copy(emb_hbm.at[pl.ds(row, 1), :],
                                   rows.at[pl.ds(i, 1), :],
                                   sems.at[i])
        cp.start()
        copies.append(cp)
    for cp in copies:
        cp.wait()

    # 2) Mean context embedding on the VPU: (1, Dp) f32.
    mean = jnp.sum(rows[...], axis=0, keepdims=True) * (1.0 / C)

    # 3) Logits tile = mean @ W^T[:, tile] + b[tile]  (bf16 MXU, f32 accumulate).
    logits = jnp.dot(mean.astype(jnp.bfloat16), wt_ref[...],
                     preferred_element_type=jnp.float32) + b_ref[...]
    logits_ref[...] = logits

    # 4) Per-tile softmax partials; combined + subtracted in the wrapper.
    #    Padded vocab lanes carry -1e30 bias (f32) -> exp underflows to 0.
    m = jnp.max(logits, axis=-1, keepdims=True)
    l = jnp.sum(jnp.exp(logits - m), axis=-1, keepdims=True)
    m_ref[...] = jnp.broadcast_to(m, m_ref.shape)
    l_ref[...] = jnp.broadcast_to(l, l_ref.shape)


def prepare_cbow_params(emb_table, w, b):
    """One-time layout plumbing (hoisted out of the per-call forward path)."""
    V, D = emb_table.shape
    Dp = _round_up(D, LANE)
    Vp = _round_up(V, LANE)
    emb_p = jnp.zeros((V, Dp), jnp.float32).at[:, :D].set(
        emb_table.astype(jnp.float32))
    wt_p = jnp.zeros((Dp, Vp), jnp.bfloat16).at[:D, :V].set(
        w.astype(jnp.bfloat16).T)
    b_p = jnp.full((1, Vp), -1e30, jnp.float32).at[0, :V].set(
        b.astype(jnp.float32))
    return emb_p, wt_p, b_p


@jax.jit
def cbow_forward(indices, emb_p, wt_p, b_p):
    C = indices.shape[0]
    V, Dp = emb_p.shape
    Vp = wt_p.shape[1]

    # Vocab tile width: largest standard tile that divides the padded vocab.
    TV = LANE
    for cand in (2048, 1024, 512, 256):
        if Vp % cand == 0:
            TV = cand
            break
    G = Vp // TV

    grid_spec = pltpu.PrefetchScalarGridSpec(
        num_scalar_prefetch=1,                       # token ids -> SMEM
        grid=(G,),                                   # tiles of the vocab axis
        in_specs=[
            pl.BlockSpec(memory_space=pl.ANY),               # emb table (HBM)
            pl.BlockSpec((Dp, TV), lambda j, idx: (0, j)),   # W^T tile (bf16)
            pl.BlockSpec((1, TV), lambda j, idx: (0, j)),    # bias tile (f32)
        ],
        out_specs=[
            pl.BlockSpec((1, TV), lambda j, idx: (0, j)),    # logits tile
            pl.BlockSpec((1, LANE), lambda j, idx: (j, 0)),  # per-tile max
            pl.BlockSpec((1, LANE), lambda j, idx: (j, 0)),  # per-tile sum-exp
        ],
        scratch_shapes=[
            pltpu.VMEM((C, Dp), jnp.float32),       # gathered context rows
            pltpu.SemaphoreType.DMA((C,)),          # one sem per row DMA
        ],
    )

    logits_p, m_t, l_t = pl.pallas_call(
        cbow_kernel,
        out_shape=(
            jax.ShapeDtypeStruct((1, Vp), jnp.float32),
            jax.ShapeDtypeStruct((G, LANE), jnp.float32),
            jax.ShapeDtypeStruct((G, LANE), jnp.float32),
        ),
        grid_spec=grid_spec,
        compiler_params=pltpu.CompilerParams(
            # Vocab tiles are independent -> v7x megacore splits them 2-way;
            # harmless on single-TC v5e/v6e.
            dimension_semantics=("parallel",),
        ),
    )(indices.astype(jnp.int32), emb_p, wt_p, b_p)

    # Cheap O(G)+O(V) normalization pass: combine the per-tile (max, sum-exp)
    # partials into a scalar logsumexp and subtract it from the logits.
    m_t = m_t[:, 0]
    l_t = l_t[:, 0]
    m_g = jnp.max(m_t)
    lse = m_g + jnp.log(jnp.sum(jnp.exp(m_t - m_g) * l_t))
    return logits_p[:, :V] - lse


if __name__ == "__main__":
    vocab_size = 64
    embedding_dim = 50       # fixed by nn.Linear(50, vocab_size) in the module
    context_size = 8

    key = jax.random.PRNGKey(0)
    k_idx, k_emb, k_w, k_b = jax.random.split(key, 4)

    # Deterministic synthetic parameters (shapes from the module's __init__).
    indices = jax.random.randint(
        k_idx, (context_size,), 0, vocab_size, dtype=jnp.int32)
    emb_table = jax.random.normal(k_emb, (vocab_size, embedding_dim), jnp.float32)
    w = jax.random.normal(k_w, (vocab_size, embedding_dim), jnp.float32) * 0.1
    b = jax.random.normal(k_b, (vocab_size,), jnp.float32) * 0.1

    # One-time parameter layout (padding / transpose / bf16), NOT per-call.
    emb_p, wt_p, b_p = prepare_cbow_params(emb_table, w, b)

    out = cbow_forward(indices, emb_p, wt_p, b_p)
    out = jax.block_until_ready(out)

    # Pure-JAX reference of the PyTorch forward.  The linear weight is rounded
    # through bf16 so the reference consumes the same parameter values the
    # kernel streams; remaining differences are bf16 MXU rounding only.
    w_eff = w.astype(jnp.bfloat16).astype(jnp.float32)
    embeds = emb_table[indices]                          # (C, D)
    mean = jnp.mean(embeds, axis=0)                      # (D,)
    logits = mean @ w_eff.T + b                          # (V,)
    ref = jax.nn.log_softmax(logits)[None, :]            # (1, V)

    assert out.shape == (1, vocab_size)
    assert jnp.allclose(out, ref, atol=2e-2, rtol=2e-2), "mismatch vs reference"
    print("KERNEL_OK")
</pallas_src>

<mosaic_0001>
module attributes {stable_mosaic.version = 11 : i64} {
  func.func @cbow_kernel(%arg0: i32, %arg1: memref<8xi32, #tpu.memory_space<smem>>, %arg2: memref<64x128xf32, #tpu.memory_space<any>>, %arg3: memref<128x128xbf16, #tpu.memory_space<vmem>>, %arg4: memref<1x128xf32, #tpu.memory_space<vmem>>, %arg5: memref<1x128xf32, #tpu.memory_space<vmem>>, %arg6: memref<1x128xf32, #tpu.memory_space<vmem>>, %arg7: memref<1x128xf32, #tpu.memory_space<vmem>>, %arg8: memref<8x128xf32, #tpu.memory_space<vmem>>, %arg9: memref<8x!tpu.dma_semaphore, #tpu.memory_space<semaphore_mem>>) attributes {dimension_semantics = [#tpu.dimension_semantics<parallel>], iteration_bounds = array<i64: 1>, scalar_prefetch = 1 : i64, scratch_operands = 2 : i64, tpu.core_type = #tpu.core_type<tc>, window_params = [{}, {transform_indices = @transform_1, window_bounds = array<i64: 128, 128>}, {transform_indices = @transform_2, window_bounds = array<i64: 1, 128>}, {transform_indices = @transform_3, window_bounds = array<i64: 1, 128>}, {transform_indices = @transform_4, window_bounds = array<i64: 1, 128>}, {transform_indices = @transform_5, window_bounds = array<i64: 1, 128>}]} {
    %c0 = arith.constant 0 : index
    %0 = memref.load %arg1[%c0] : memref<8xi32, #tpu.memory_space<smem>>
    %c0_i32 = arith.constant 0 : i32
    %c63_i32 = arith.constant 63 : i32
    %1 = arith.maxsi %c0_i32, %0 : i32
    %2 = arith.minsi %c63_i32, %1 : i32
    %c0_i32_0 = arith.constant 0 : i32
    %c0_i32_1 = arith.constant 0 : i32
    %3 = tpu.memref_slice %arg2[%2, %c0_i32_1] : memref<64x128xf32, #tpu.memory_space<any>> -> memref<1x128xf32, #tpu.memory_space<any>>
    %c0_i32_2 = arith.constant 0 : i32
    %c0_i32_3 = arith.constant 0 : i32
    %4 = tpu.memref_slice %arg8[%c0_i32_2, %c0_i32_3] : memref<8x128xf32, #tpu.memory_space<vmem>> -> memref<1x128xf32, #tpu.memory_space<vmem>>
    %5 = tpu.memref_slice %arg9[%c0_i32_0] : memref<8x!tpu.dma_semaphore, #tpu.memory_space<semaphore_mem>> -> memref<1x!tpu.dma_semaphore, #tpu.memory_space<semaphore_mem>>
    %6 = tpu.memref_squeeze %5 : memref<1x!tpu.dma_semaphore, #tpu.memory_space<semaphore_mem>> -> memref<!tpu.dma_semaphore, #tpu.memory_space<semaphore_mem>>
    tpu.enqueue_dma source(%3 : memref<1x128xf32, #tpu.memory_space<any>>) target(%4 : memref<1x128xf32, #tpu.memory_space<vmem>>) target_semaphore(%6 : memref<!tpu.dma_semaphore, #tpu.memory_space<semaphore_mem>>)
    %c1 = arith.constant 1 : index
    %7 = memref.load %arg1[%c1] : memref<8xi32, #tpu.memory_space<smem>>
    %c0_i32_4 = arith.constant 0 : i32
    %c63_i32_5 = arith.constant 63 : i32
    %8 = arith.maxsi %c0_i32_4, %7 : i32
    %9 = arith.minsi %c63_i32_5, %8 : i32
    %c1_i32 = arith.constant 1 : i32
    %c0_i32_6 = arith.constant 0 : i32
    %10 = tpu.memref_slice %arg2[%9, %c0_i32_6] : memref<64x128xf32, #tpu.memory_space<any>> -> memref<1x128xf32, #tpu.memory_space<any>>
    %c1_i32_7 = arith.constant 1 : i32
    %c0_i32_8 = arith.constant 0 : i32
    %11 = tpu.memref_slice %arg8[%c1_i32_7, %c0_i32_8] : memref<8x128xf32, #tpu.memory_space<vmem>> -> memref<1x128xf32, #tpu.memory_space<vmem>>
    %12 = tpu.memref_slice %arg9[%c1_i32] : memref<8x!tpu.dma_semaphore, #tpu.memory_space<semaphore_mem>> -> memref<1x!tpu.dma_semaphore, #tpu.memory_space<semaphore_mem>>
    %13 = tpu.memref_squeeze %12 : memref<1x!tpu.dma_semaphore, #tpu.memory_space<semaphore_mem>> -> memref<!tpu.dma_semaphore, #tpu.memory_space<semaphore_mem>>
    tpu.enqueue_dma source(%10 : memref<1x128xf32, #tpu.memory_space<any>>) target(%11 : memref<1x128xf32, #tpu.memory_space<vmem>>) target_semaphore(%13 : memref<!tpu.dma_semaphore, #tpu.memory_space<semaphore_mem>>)
    %c2 = arith.constant 2 : index
    %14 = memref.load %arg1[%c2] : memref<8xi32, #tpu.memory_space<smem>>
    %c0_i32_9 = arith.constant 0 : i32
    %c63_i32_10 = arith.constant 63 : i32
    %15 = arith.maxsi %c0_i32_9, %14 : i32
    %16 = arith.minsi %c63_i32_10, %15 : i32
    %c2_i32 = arith.constant 2 : i32
    %c0_i32_11 = arith.constant 0 : i32
    %17 = tpu.memref_slice %arg2[%16, %c0_i32_11] : memref<64x128xf32, #tpu.memory_space<any>> -> memref<1x128xf32, #tpu.memory_space<any>>
    %c2_i32_12 = arith.constant 2 : i32
    %c0_i32_13 = arith.constant 0 : i32
    %18 = tpu.memref_slice %arg8[%c2_i32_12, %c0_i32_13] : memref<8x128xf32, #tpu.memory_space<vmem>> -> memref<1x128xf32, #tpu.memory_space<vmem>>
    %19 = tpu.memref_slice %arg9[%c2_i32] : memref<8x!tpu.dma_semaphore, #tpu.memory_space<semaphore_mem>> -> memref<1x!tpu.dma_semaphore, #tpu.memory_space<semaphore_mem>>
    %20 = tpu.memref_squeeze %19 : memref<1x!tpu.dma_semaphore, #tpu.memory_space<semaphore_mem>> -> memref<!tpu.dma_semaphore, #tpu.memory_space<semaphore_mem>>
    tpu.enqueue_dma source(%17 : memref<1x128xf32, #tpu.memory_space<any>>) target(%18 : memref<1x128xf32, #tpu.memory_space<vmem>>) target_semaphore(%20 : memref<!tpu.dma_semaphore, #tpu.memory_space<semaphore_mem>>)
    %c3 = arith.constant 3 : index
    %21 = memref.load %arg1[%c3] : memref<8xi32, #tpu.memory_space<smem>>
    %c0_i32_14 = arith.constant 0 : i32
    %c63_i32_15 = arith.constant 63 : i32
    %22 = arith.maxsi %c0_i32_14, %21 : i32
    %23 = arith.minsi %c63_i32_15, %22 : i32
    %c3_i32 = arith.constant 3 : i32
    %c0_i32_16 = arith.constant 0 : i32
    %24 = tpu.memref_slice %arg2[%23, %c0_i32_16] : memref<64x128xf32, #tpu.memory_space<any>> -> memref<1x128xf32, #tpu.memory_space<any>>
    %c3_i32_17 = arith.constant 3 : i32
    %c0_i32_18 = arith.constant 0 : i32
    %25 = tpu.memref_slice %arg8[%c3_i32_17, %c0_i32_18] : memref<8x128xf32, #tpu.memory_space<vmem>> -> memref<1x128xf32, #tpu.memory_space<vmem>>
    %26 = tpu.memref_slice %arg9[%c3_i32] : memref<8x!tpu.dma_semaphore, #tpu.memory_space<semaphore_mem>> -> memref<1x!tpu.dma_semaphore, #tpu.memory_space<semaphore_mem>>
    %27 = tpu.memref_squeeze %26 : memref<1x!tpu.dma_semaphore, #tpu.memory_space<semaphore_mem>> -> memref<!tpu.dma_semaphore, #tpu.memory_space<semaphore_mem>>
    tpu.enqueue_dma source(%24 : memref<1x128xf32, #tpu.memory_space<any>>) target(%25 : memref<1x128xf32, #tpu.memory_space<vmem>>) target_semaphore(%27 : memref<!tpu.dma_semaphore, #tpu.memory_space<semaphore_mem>>)
    %c4 = arith.constant 4 : index
    %28 = memref.load %arg1[%c4] : memref<8xi32, #tpu.memory_space<smem>>
    %c0_i32_19 = arith.constant 0 : i32
    %c63_i32_20 = arith.constant 63 : i32
    %29 = arith.maxsi %c0_i32_19, %28 : i32
    %30 = arith.minsi %c63_i32_20, %29 : i32
    %c4_i32 = arith.constant 4 : i32
    %c0_i32_21 = arith.constant 0 : i32
    %31 = tpu.memref_slice %arg2[%30, %c0_i32_21] : memref<64x128xf32, #tpu.memory_space<any>> -> memref<1x128xf32, #tpu.memory_space<any>>
    %c4_i32_22 = arith.constant 4 : i32
    %c0_i32_23 = arith.constant 0 : i32
    %32 = tpu.memref_slice %arg8[%c4_i32_22, %c0_i32_23] : memref<8x128xf32, #tpu.memory_space<vmem>> -> memref<1x128xf32, #tpu.memory_space<vmem>>
    %33 = tpu.memref_slice %arg9[%c4_i32] : memref<8x!tpu.dma_semaphore, #tpu.memory_space<semaphore_mem>> -> memref<1x!tpu.dma_semaphore, #tpu.memory_space<semaphore_mem>>
    %34 = tpu.memref_squeeze %33 : memref<1x!tpu.dma_semaphore, #tpu.memory_space<semaphore_mem>> -> memref<!tpu.dma_semaphore, #tpu.memory_space<semaphore_mem>>
    tpu.enqueue_dma source(%31 : memref<1x128xf32, #tpu.memory_space<any>>) target(%32 : memref<1x128xf32, #tpu.memory_space<vmem>>) target_semaphore(%34 : memref<!tpu.dma_semaphore, #tpu.memory_space<semaphore_mem>>)
    %c5 = arith.constant 5 : index
    %35 = memref.load %arg1[%c5] : memref<8xi32, #tpu.memory_space<smem>>
    %c0_i32_24 = arith.constant 0 : i32
    %c63_i32_25 = arith.constant 63 : i32
    %36 = arith.maxsi %c0_i32_24, %35 : i32
    %37 = arith.minsi %c63_i32_25, %36 : i32
    %c5_i32 = arith.constant 5 : i32
    %c0_i32_26 = arith.constant 0 : i32
    %38 = tpu.memref_slice %arg2[%37, %c0_i32_26] : memref<64x128xf32, #tpu.memory_space<any>> -> memref<1x128xf32, #tpu.memory_space<any>>
    %c5_i32_27 = arith.constant 5 : i32
    %c0_i32_28 = arith.constant 0 : i32
    %39 = tpu.memref_slice %arg8[%c5_i32_27, %c0_i32_28] : memref<8x128xf32, #tpu.memory_space<vmem>> -> memref<1x128xf32, #tpu.memory_space<vmem>>
    %40 = tpu.memref_slice %arg9[%c5_i32] : memref<8x!tpu.dma_semaphore, #tpu.memory_space<semaphore_mem>> -> memref<1x!tpu.dma_semaphore, #tpu.memory_space<semaphore_mem>>
    %41 = tpu.memref_squeeze %40 : memref<1x!tpu.dma_semaphore, #tpu.memory_space<semaphore_mem>> -> memref<!tpu.dma_semaphore, #tpu.memory_space<semaphore_mem>>
    tpu.enqueue_dma source(%38 : memref<1x128xf32, #tpu.memory_space<any>>) target(%39 : memref<1x128xf32, #tpu.memory_space<vmem>>) target_semaphore(%41 : memref<!tpu.dma_semaphore, #tpu.memory_space<semaphore_mem>>)
    %c6 = arith.constant 6 : index
    %42 = memref.load %arg1[%c6] : memref<8xi32, #tpu.memory_space<smem>>
    %c0_i32_29 = arith.constant 0 : i32
    %c63_i32_30 = arith.constant 63 : i32
    %43 = arith.maxsi %c0_i32_29, %42 : i32
    %44 = arith.minsi %c63_i32_30, %43 : i32
    %c6_i32 = arith.constant 6 : i32
    %c0_i32_31 = arith.constant 0 : i32
    %45 = tpu.memref_slice %arg2[%44, %c0_i32_31] : memref<64x128xf32, #tpu.memory_space<any>> -> memref<1x128xf32, #tpu.memory_space<any>>
    %c6_i32_32 = arith.constant 6 : i32
    %c0_i32_33 = arith.constant 0 : i32
    %46 = tpu.memref_slice %arg8[%c6_i32_32, %c0_i32_33] : memref<8x128xf32, #tpu.memory_space<vmem>> -> memref<1x128xf32, #tpu.memory_space<vmem>>
    %47 = tpu.memref_slice %arg9[%c6_i32] : memref<8x!tpu.dma_semaphore, #tpu.memory_space<semaphore_mem>> -> memref<1x!tpu.dma_semaphore, #tpu.memory_space<semaphore_mem>>
    %48 = tpu.memref_squeeze %47 : memref<1x!tpu.dma_semaphore, #tpu.memory_space<semaphore_mem>> -> memref<!tpu.dma_semaphore, #tpu.memory_space<semaphore_mem>>
    tpu.enqueue_dma source(%45 : memref<1x128xf32, #tpu.memory_space<any>>) target(%46 : memref<1x128xf32, #tpu.memory_space<vmem>>) target_semaphore(%48 : memref<!tpu.dma_semaphore, #tpu.memory_space<semaphore_mem>>)
    %c7 = arith.constant 7 : index
    %49 = memref.load %arg1[%c7] : memref<8xi32, #tpu.memory_space<smem>>
    %c0_i32_34 = arith.constant 0 : i32
    %c63_i32_35 = arith.constant 63 : i32
    %50 = arith.maxsi %c0_i32_34, %49 : i32
    %51 = arith.minsi %c63_i32_35, %50 : i32
    %c7_i32 = arith.constant 7 : i32
    %c0_i32_36 = arith.constant 0 : i32
    %52 = tpu.memref_slice %arg2[%51, %c0_i32_36] : memref<64x128xf32, #tpu.memory_space<any>> -> memref<1x128xf32, #tpu.memory_space<any>>
    %c7_i32_37 = arith.constant 7 : i32
    %c0_i32_38 = arith.constant 0 : i32
    %53 = tpu.memref_slice %arg8[%c7_i32_37, %c0_i32_38] : memref<8x128xf32, #tpu.memory_space<vmem>> -> memref<1x128xf32, #tpu.memory_space<vmem>>
    %54 = tpu.memref_slice %arg9[%c7_i32] : memref<8x!tpu.dma_semaphore, #tpu.memory_space<semaphore_mem>> -> memref<1x!tpu.dma_semaphore, #tpu.memory_space<semaphore_mem>>
    %55 = tpu.memref_squeeze %54 : memref<1x!tpu.dma_semaphore, #tpu.memory_space<semaphore_mem>> -> memref<!tpu.dma_semaphore, #tpu.memory_space<semaphore_mem>>
    tpu.enqueue_dma source(%52 : memref<1x128xf32, #tpu.memory_space<any>>) target(%53 : memref<1x128xf32, #tpu.memory_space<vmem>>) target_semaphore(%55 : memref<!tpu.dma_semaphore, #tpu.memory_space<semaphore_mem>>)
    %c0_i32_39 = arith.constant 0 : i32
    %c0_i32_40 = arith.constant 0 : i32
    %56 = tpu.memref_slice %arg2[%2, %c0_i32_40] : memref<64x128xf32, #tpu.memory_space<any>> -> memref<1x128xf32, #tpu.memory_space<any>>
    %c0_i32_41 = arith.constant 0 : i32
    %c0_i32_42 = arith.constant 0 : i32
    %57 = tpu.memref_slice %arg8[%c0_i32_41, %c0_i32_42] : memref<8x128xf32, #tpu.memory_space<vmem>> -> memref<1x128xf32, #tpu.memory_space<vmem>>
    %58 = tpu.memref_slice %arg9[%c0_i32_39] : memref<8x!tpu.dma_semaphore, #tpu.memory_space<semaphore_mem>> -> memref<1x!tpu.dma_semaphore, #tpu.memory_space<semaphore_mem>>
    %59 = tpu.memref_squeeze %58 : memref<1x!tpu.dma_semaphore, #tpu.memory_space<semaphore_mem>> -> memref<!tpu.dma_semaphore, #tpu.memory_space<semaphore_mem>>
    tpu.wait_dma2 semaphore(%59 : memref<!tpu.dma_semaphore, #tpu.memory_space<semaphore_mem>>) src(%56 : memref<1x128xf32, #tpu.memory_space<any>>) dst(%57 : memref<1x128xf32, #tpu.memory_space<vmem>>)
    %c1_i32_43 = arith.constant 1 : i32
    %c0_i32_44 = arith.constant 0 : i32
    %60 = tpu.memref_slice %arg2[%9, %c0_i32_44] : memref<64x128xf32, #tpu.memory_space<any>> -> memref<1x128xf32, #tpu.memory_space<any>>
    %c1_i32_45 = arith.constant 1 : i32
    %c0_i32_46 = arith.constant 0 : i32
    %61 = tpu.memref_slice %arg8[%c1_i32_45, %c0_i32_46] : memref<8x128xf32, #tpu.memory_space<vmem>> -> memref<1x128xf32, #tpu.memory_space<vmem>>
    %62 = tpu.memref_slice %arg9[%c1_i32_43] : memref<8x!tpu.dma_semaphore, #tpu.memory_space<semaphore_mem>> -> memref<1x!tpu.dma_semaphore, #tpu.memory_space<semaphore_mem>>
    %63 = tpu.memref_squeeze %62 : memref<1x!tpu.dma_semaphore, #tpu.memory_space<semaphore_mem>> -> memref<!tpu.dma_semaphore, #tpu.memory_space<semaphore_mem>>
    tpu.wait_dma2 semaphore(%63 : memref<!tpu.dma_semaphore, #tpu.memory_space<semaphore_mem>>) src(%60 : memref<1x128xf32, #tpu.memory_space<any>>) dst(%61 : memref<1x128xf32, #tpu.memory_space<vmem>>)
    %c2_i32_47 = arith.constant 2 : i32
    %c0_i32_48 = arith.constant 0 : i32
    %64 = tpu.memref_slice %arg2[%16, %c0_i32_48] : memref<64x128xf32, #tpu.memory_space<any>> -> memref<1x128xf32, #tpu.memory_space<any>>
    %c2_i32_49 = arith.constant 2 : i32
    %c0_i32_50 = arith.constant 0 : i32
    %65 = tpu.memref_slice %arg8[%c2_i32_49, %c0_i32_50] : memref<8x128xf32, #tpu.memory_space<vmem>> -> memref<1x128xf32, #tpu.memory_space<vmem>>
    %66 = tpu.memref_slice %arg9[%c2_i32_47] : memref<8x!tpu.dma_semaphore, #tpu.memory_space<semaphore_mem>> -> memref<1x!tpu.dma_semaphore, #tpu.memory_space<semaphore_mem>>
    %67 = tpu.memref_squeeze %66 : memref<1x!tpu.dma_semaphore, #tpu.memory_space<semaphore_mem>> -> memref<!tpu.dma_semaphore, #tpu.memory_space<semaphore_mem>>
    tpu.wait_dma2 semaphore(%67 : memref<!tpu.dma_semaphore, #tpu.memory_space<semaphore_mem>>) src(%64 : memref<1x128xf32, #tpu.memory_space<any>>) dst(%65 : memref<1x128xf32, #tpu.memory_space<vmem>>)
    %c3_i32_51 = arith.constant 3 : i32
    %c0_i32_52 = arith.constant 0 : i32
    %68 = tpu.memref_slice %arg2[%23, %c0_i32_52] : memref<64x128xf32, #tpu.memory_space<any>> -> memref<1x128xf32, #tpu.memory_space<any>>
    %c3_i32_53 = arith.constant 3 : i32
    %c0_i32_54 = arith.constant 0 : i32
    %69 = tpu.memref_slice %arg8[%c3_i32_53, %c0_i32_54] : memref<8x128xf32, #tpu.memory_space<vmem>> -> memref<1x128xf32, #tpu.memory_space<vmem>>
    %70 = tpu.memref_slice %arg9[%c3_i32_51] : memref<8x!tpu.dma_semaphore, #tpu.memory_space<semaphore_mem>> -> memref<1x!tpu.dma_semaphore, #tpu.memory_space<semaphore_mem>>
    %71 = tpu.memref_squeeze %70 : memref<1x!tpu.dma_semaphore, #tpu.memory_space<semaphore_mem>> -> memref<!tpu.dma_semaphore, #tpu.memory_space<semaphore_mem>>
    tpu.wait_dma2 semaphore(%71 : memref<!tpu.dma_semaphore, #tpu.memory_space<semaphore_mem>>) src(%68 : memref<1x128xf32, #tpu.memory_space<any>>) dst(%69 : memref<1x128xf32, #tpu.memory_space<vmem>>)
    %c4_i32_55 = arith.constant 4 : i32
    %c0_i32_56 = arith.constant 0 : i32
    %72 = tpu.memref_slice %arg2[%30, %c0_i32_56] : memref<64x128xf32, #tpu.memory_space<any>> -> memref<1x128xf32, #tpu.memory_space<any>>
    %c4_i32_57 = arith.constant 4 : i32
    %c0_i32_58 = arith.constant 0 : i32
    %73 = tpu.memref_slice %arg8[%c4_i32_57, %c0_i32_58] : memref<8x128xf32, #tpu.memory_space<vmem>> -> memref<1x128xf32, #tpu.memory_space<vmem>>
    %74 = tpu.memref_slice %arg9[%c4_i32_55] : memref<8x!tpu.dma_semaphore, #tpu.memory_space<semaphore_mem>> -> memref<1x!tpu.dma_semaphore, #tpu.memory_space<semaphore_mem>>
    %75 = tpu.memref_squeeze %74 : memref<1x!tpu.dma_semaphore, #tpu.memory_space<semaphore_mem>> -> memref<!tpu.dma_semaphore, #tpu.memory_space<semaphore_mem>>
    tpu.wait_dma2 semaphore(%75 : memref<!tpu.dma_semaphore, #tpu.memory_space<semaphore_mem>>) src(%72 : memref<1x128xf32, #tpu.memory_space<any>>) dst(%73 : memref<1x128xf32, #tpu.memory_space<vmem>>)
    %c5_i32_59 = arith.constant 5 : i32
    %c0_i32_60 = arith.constant 0 : i32
    %76 = tpu.memref_slice %arg2[%37, %c0_i32_60] : memref<64x128xf32, #tpu.memory_space<any>> -> memref<1x128xf32, #tpu.memory_space<any>>
    %c5_i32_61 = arith.constant 5 : i32
    %c0_i32_62 = arith.constant 0 : i32
    %77 = tpu.memref_slice %arg8[%c5_i32_61, %c0_i32_62] : memref<8x128xf32, #tpu.memory_space<vmem>> -> memref<1x128xf32, #tpu.memory_space<vmem>>
    %78 = tpu.memref_slice %arg9[%c5_i32_59] : memref<8x!tpu.dma_semaphore, #tpu.memory_space<semaphore_mem>> -> memref<1x!tpu.dma_semaphore, #tpu.memory_space<semaphore_mem>>
    %79 = tpu.memref_squeeze %78 : memref<1x!tpu.dma_semaphore, #tpu.memory_space<semaphore_mem>> -> memref<!tpu.dma_semaphore, #tpu.memory_space<semaphore_mem>>
    tpu.wait_dma2 semaphore(%79 : memref<!tpu.dma_semaphore, #tpu.memory_space<semaphore_mem>>) src(%76 : memref<1x128xf32, #tpu.memory_space<any>>) dst(%77 : memref<1x128xf32, #tpu.memory_space<vmem>>)
    %c6_i32_63 = arith.constant 6 : i32
    %c0_i32_64 = arith.constant 0 : i32
    %80 = tpu.memref_slice %arg2[%44, %c0_i32_64] : memref<64x128xf32, #tpu.memory_space<any>> -> memref<1x128xf32, #tpu.memory_space<any>>
    %c6_i32_65 = arith.constant 6 : i32
    %c0_i32_66 = arith.constant 0 : i32
    %81 = tpu.memref_slice %arg8[%c6_i32_65, %c0_i32_66] : memref<8x128xf32, #tpu.memory_space<vmem>> -> memref<1x128xf32, #tpu.memory_space<vmem>>
    %82 = tpu.memref_slice %arg9[%c6_i32_63] : memref<8x!tpu.dma_semaphore, #tpu.memory_space<semaphore_mem>> -> memref<1x!tpu.dma_semaphore, #tpu.memory_space<semaphore_mem>>
    %83 = tpu.memref_squeeze %82 : memref<1x!tpu.dma_semaphore, #tpu.memory_space<semaphore_mem>> -> memref<!tpu.dma_semaphore, #tpu.memory_space<semaphore_mem>>
    tpu.wait_dma2 semaphore(%83 : memref<!tpu.dma_semaphore, #tpu.memory_space<semaphore_mem>>) src(%80 : memref<1x128xf32, #tpu.memory_space<any>>) dst(%81 : memref<1x128xf32, #tpu.memory_space<vmem>>)
    %c7_i32_67 = arith.constant 7 : i32
    %c0_i32_68 = arith.constant 0 : i32
    %84 = tpu.memref_slice %arg2[%51, %c0_i32_68] : memref<64x128xf32, #tpu.memory_space<any>> -> memref<1x128xf32, #tpu.memory_space<any>>
    %c7_i32_69 = arith.constant 7 : i32
    %c0_i32_70 = arith.constant 0 : i32
    %85 = tpu.memref_slice %arg8[%c7_i32_69, %c0_i32_70] : memref<8x128xf32, #tpu.memory_space<vmem>> -> memref<1x128xf32, #tpu.memory_space<vmem>>
    %86 = tpu.memref_slice %arg9[%c7_i32_67] : memref<8x!tpu.dma_semaphore, #tpu.memory_space<semaphore_mem>> -> memref<1x!tpu.dma_semaphore, #tpu.memory_space<semaphore_mem>>
    %87 = tpu.memref_squeeze %86 : memref<1x!tpu.dma_semaphore, #tpu.memory_space<semaphore_mem>> -> memref<!tpu.dma_semaphore, #tpu.memory_space<semaphore_mem>>
    tpu.wait_dma2 semaphore(%87 : memref<!tpu.dma_semaphore, #tpu.memory_space<semaphore_mem>>) src(%84 : memref<1x128xf32, #tpu.memory_space<any>>) dst(%85 : memref<1x128xf32, #tpu.memory_space<vmem>>)
    %c0_71 = arith.constant 0 : index
    %c0_72 = arith.constant 0 : index
    %88 = vector.load %arg8[%c0_71, %c0_72] : memref<8x128xf32, #tpu.memory_space<vmem>>, vector<8x128xf32>
    %cst = arith.constant dense<0.000000e+00> : vector<128xf32>
    %89 = vector.multi_reduction <add>, %88, %cst [0] : vector<8x128xf32> to vector<128xf32>
    %90 = vector.shape_cast %89 : vector<128xf32> to vector<1x128xf32>
    %cst_73 = arith.constant 1.250000e-01 : f32
    %91 = vector.broadcast %cst_73 : f32 to vector<1x128xf32>
    %92 = arith.mulf %90, %91 : vector<1x128xf32>
    %93 = arith.truncf %92 : vector<1x128xf32> to vector<1x128xbf16>
    %c0_74 = arith.constant 0 : index
    %c0_75 = arith.constant 0 : index
    %94 = vector.load %arg3[%c0_74, %c0_75] : memref<128x128xbf16, #tpu.memory_space<vmem>>, vector<128x128xbf16>
    %cst_76 = arith.constant dense<0.000000e+00> : vector<1x128xf32>
    %95 = tpu.matmul %93, %94, %cst_76 {dimension_numbers = #tpu.dot_dimension_numbers<[1], [0], [0], [1], [0, 0, 1, 1], [], []>} : vector<1x128xbf16>, vector<128x128xbf16>, vector<1x128xf32> -> vector<1x128xf32>
    %c0_77 = arith.constant 0 : index
    %c0_78 = arith.constant 0 : index
    %96 = vector.load %arg4[%c0_77, %c0_78] : memref<1x128xf32, #tpu.memory_space<vmem>>, vector<1x128xf32>
    %97 = arith.addf %95, %96 : vector<1x128xf32>
    %c0_79 = arith.constant 0 : index
    %c0_80 = arith.constant 0 : index
    %98 = vector.load %arg5[%c0_79, %c0_80] : memref<1x128xf32, #tpu.memory_space<vmem>>, vector<1x128xf32>
    tpu.vector_store %arg5[%c0_79, %c0_80], %97 {strides = array<i32>} : memref<1x128xf32, #tpu.memory_space<vmem>>, vector<1x128xf32>,
    %cst_81 = arith.constant dense<0xFF800000> : vector<1xf32>
    %99 = vector.multi_reduction <maximumf>, %97, %cst_81 [1] : vector<1x128xf32> to vector<1xf32>
    %100 = vector.shape_cast %99 : vector<1xf32> to vector<1x1xf32>
    %101 = vector.broadcast %100 : vector<1x1xf32> to vector<1x128xf32>
    %102 = arith.subf %97, %101 : vector<1x128xf32>
    %103 = math.exp %102 : vector<1x128xf32>
    %cst_82 = arith.constant dense<0.000000e+00> : vector<1xf32>
    %104 = vector.multi_reduction <add>, %103, %cst_82 [1] : vector<1x128xf32> to vector<1xf32>
    %105 = vector.shape_cast %104 : vector<1xf32> to vector<1x1xf32>
    %106 = vector.shape_cast %100 : vector<1x1xf32> to vector<1x1xf32>
    %107 = vector.broadcast %106 : vector<1x1xf32> to vector<1x128xf32>
    %c0_83 = arith.constant 0 : index
    %c0_84 = arith.constant 0 : index
    %108 = vector.load %arg6[%c0_83, %c0_84] : memref<1x128xf32, #tpu.memory_space<vmem>>, vector<1x128xf32>
    tpu.vector_store %arg6[%c0_83, %c0_84], %107 {strides = array<i32>} : memref<1x128xf32, #tpu.memory_space<vmem>>, vector<1x128xf32>,
    %109 = vector.shape_cast %105 : vector<1x1xf32> to vector<1x1xf32>
    %110 = vector.broadcast %109 : vector<1x1xf32> to vector<1x128xf32>
    %c0_85 = arith.constant 0 : index
    %c0_86 = arith.constant 0 : index
    %111 = vector.load %arg7[%c0_85, %c0_86] : memref<1x128xf32, #tpu.memory_space<vmem>>, vector<1x128xf32>
    tpu.vector_store %arg7[%c0_85, %c0_86], %110 {strides = array<i32>} : memref<1x128xf32, #tpu.memory_space<vmem>>, vector<1x128xf32>,
    return
  }
  func.func @transform_1(%arg0: i32, %arg1: memref<8xi32, #tpu.memory_space<smem>>) -> (i32, i32) {
    %c0_i32 = arith.constant 0 : i32
    %c0_i32_0 = arith.constant 0 : i32
    return %c0_i32, %arg0 : i32, i32
  }
  func.func @transform_2(%arg0: i32, %arg1: memref<8xi32, #tpu.memory_space<smem>>) -> (i32, i32) {
    %c0_i32 = arith.constant 0 : i32
    %c0_i32_0 = arith.constant 0 : i32
    return %c0_i32, %arg0 : i32, i32
  }
  func.func @transform_3(%arg0: i32, %arg1: memref<8xi32, #tpu.memory_space<smem>>) -> (i32, i32) {
    %c0_i32 = arith.constant 0 : i32
    %c0_i32_0 = arith.constant 0 : i32
    return %c0_i32, %arg0 : i32, i32
  }
  func.func @transform_4(%arg0: i32, %arg1: memref<8xi32, #tpu.memory_space<smem>>) -> (i32, i32) {
    %c0_i32 = arith.constant 0 : i32
    %c0_i32_0 = arith.constant 0 : i32
    return %arg0, %c0_i32 : i32, i32
  }
  func.func @transform_5(%arg0: i32, %arg1: memref<8xi32, #tpu.memory_space<smem>>) -> (i32, i32) {
    %c0_i32 = arith.constant 0 : i32
    %c0_i32_0 = arith.constant 0 : i32
    return %arg0, %c0_i32 : i32, i32
  }
}

</mosaic_0001>

<llo_original>
// kernel: cbow_forward.1
$region0: #{cbow_forward.1}
  #allocation0 [shape = 'u32[]', space=smem, size = 0x4, offset = 0x4, fixed_abs, tag = 'smem constant byte address 0x4 - core index']
  #allocation1 [shape = 'u32[144,128]{1,0:T(1,128)}', space=vmem, size = 0x12000, scoped, tag = 'internal scratch']
  #allocation2 [shape = 'f32[8,128]{1,0:T(8,128)}', space=vmem, size = 0x1000, scoped, tag = 'scratch operand']
  #allocation3 [shape = 's32[8]{0}', space=sflag, size = 0x20, scoped, tag = 'scratch operand']
  #allocation4 [shape = 's32[1]{0}', space=sflag, size = 0x4, scoped, tag = 'scoped memory for cbow_forward.1']
  #allocation5 [shape = 'u8[512]{0}', space=smem, size = 0x200, scoped, tag = 'prefetched SMEM operand 0']
  #allocation8 [shape = 's32[]', space=sflag, size = 0x4, offset = 0, fixed_abs, tag = 'sflag constant byte address 0x0 - dummy sync flag']
  #allocation9 [shape = 's32[]', space=sflag, size = 0x4, offset = 0, fixed_abs, tag = 'sflag constant byte address 0x0 - dummy sync flag']
  #allocation10 [shape = 'u32[]', space=smem, size = 0x4, offset = 0x44, fixed_abs, tag = 'smem constant byte address 0x44 - assertion arg 0']
  #allocation11 [shape = 'u32[]', space=smem, size = 0x4, offset = 0x48, fixed_abs, tag = 'smem constant byte address 0x48 - assertion arg 1']
  #allocation12 [shape = 's32[]', space=sflag, size = 0x4, offset = 0, fixed_abs, tag = 'sflag constant byte address 0x0 - dummy sync flag']
  #allocation13 [shape = 's32[]', space=sflag, size = 0x4, offset = 0, fixed_abs, tag = 'sflag constant byte address 0x0 - dummy sync flag']
  #allocation14 [shape = 's32[]', space=sflag, size = 0x4, offset = 0, fixed_abs, tag = 'sflag constant byte address 0x0 - dummy sync flag']
  #allocation15 [shape = 's32[]', space=sflag, size = 0x4, offset = 0, fixed_abs, tag = 'sflag constant byte address 0x0 - dummy sync flag']
  #allocation16 [shape = 's32[]', space=sflag, size = 0x4, offset = 0, fixed_abs, tag = 'sflag constant byte address 0x0 - dummy sync flag']
  #allocation17 [shape = 's32[]', space=sflag, size = 0x4, offset = 0, fixed_abs, tag = 'sflag constant byte address 0x0 - dummy sync flag']
  #allocation18 [shape = 's32[]', space=sflag, size = 0x4, offset = 0, fixed_abs, tag = 'sflag constant byte address 0x0 - dummy sync flag']
  #allocation19 [shape = 's32[]', space=sflag, size = 0x4, offset = 0, fixed_abs, tag = 'sflag constant byte address 0x0 - dummy sync flag']
  #allocation20 [shape = 's32[]', space=sflag, size = 0x4, offset = 0, fixed_abs, tag = 'sflag constant byte address 0x0 - dummy sync flag']
  #allocation21 [shape = 's32[]', space=sflag, size = 0x4, offset = 0, fixed_abs, tag = 'sflag constant byte address 0x0 - dummy sync flag']
  #allocation22 [shape = 's32[]', space=sflag, size = 0x4, offset = 0, fixed_abs, tag = 'sflag constant byte address 0x0 - dummy sync flag']
  #allocation23 [shape = 's32[]', space=sflag, size = 0x4, offset = 0, fixed_abs, tag = 'sflag constant byte address 0x0 - dummy sync flag']
  #allocation24 [shape = 's32[]', space=sflag, size = 0x4, offset = 0, fixed_abs, tag = 'sflag constant byte address 0x0 - dummy sync flag']
  #allocation25 [shape = 's32[]', space=sflag, size = 0x4, offset = 0, fixed_abs, tag = 'sflag constant byte address 0x0 - dummy sync flag']
  %s0 = inlined_call_operand.hbm [shape: s32[8], index: 0, kind: input, shape index: {}]
  %s1 = inlined_call_operand.hbm [shape: f32[64,128], index: 1, kind: input, shape index: {}]
  %s2 = inlined_call_operand.hbm [shape: bf16[128,128], index: 2, kind: input, shape index: {}]
  %s3 = inlined_call_operand.vmem [shape: f32[1,128], index: 3, kind: input, shape index: {}]
  %s4 = inlined_call_operand.vmem [shape: f32[1,128], index: 4, kind: output, shape index: {0}]
  %s5 = inlined_call_operand.vmem [shape: f32[1,128], index: 5, kind: output, shape index: {1}]
  %s6 = inlined_call_operand.vmem [shape: f32[1,128], index: 6, kind: output, shape index: {2}]
  %7 = xla_tuple %s4, %s5, %s6
  %s8 = sld [smem:[#allocation0]]
  $region70: #{cbow_forward.1} parent=0
    _
  %s10 = ssub.s32 1, %s8
  %s11 = scalar_select 0, %s10, %s8
  %13 = dma.hbm_to_smem %s0, 16, [#allocation5], [#allocation4]
  %14 = dma.done [#allocation4], 16
  %15 = sfence
  $region1: #{cbow_forward.1} parent=0
    #allocation6 [shape = 'u8[32768]{0}', space=vmem, size = 0x8000, scoped, tag = 'input window, operand 2, single buffered']
    #allocation7 [shape = 's32[1]{0}', space=sflag, size = 0x4, scoped, tag = 'scoped memory for cbow_forward.1']
    %16 = vsyncpa [#allocation7], 0
    // Predicated region
    $region2: #{cbow_forward.1} parent=1 // pred_check
      _
    $region3: #{cbow_forward.1} parent=1 // pred_check_branch
      %18 = sbr.rel (0) target = $region5
    $region4: #{cbow_forward.1} parent=1 // pred_region
      %s20 = ssub.s32 1024, 1024
      %21 = vsyncadd [#allocation7], %s20
      %s22 = sshll.u32 [#allocation6], 4
      %s23 = int_to_ptr.vmem [resolvable:$true] %s22
      %28 = dma.hbm_to_vmem [thread:$0]  %s2, 1024, %s23, [#allocation7], 64, 64, 4
    $region5: #{cbow_forward.1} parent=1 // pred_fallthru
      _
    // Predicated region
    $region6: #{cbow_forward.1} parent=1 // pred_check
      _
    $region7: #{cbow_forward.1} parent=1 // pred_check_branch
      %30 = sbr.rel (0) target = $region9
    $region8: #{cbow_forward.1} parent=1 // pred_region
      _
    $region9: #{cbow_forward.1} parent=1 // pred_fallthru
      _
    // Predicated region
    $region10: #{cbow_forward.1} parent=1 // pred_check
      _
    $region11: #{cbow_forward.1} parent=1 // pred_check_branch
      %32 = sbr.rel (0) target = $region13
    $region12: #{cbow_forward.1} parent=1 // pred_region
      %33 = dma.done [#allocation7], 1024
    $region13: #{cbow_forward.1} parent=1 // pred_fallthru
      _
    %s35 = sld [smem:[#allocation5]]
    %p36 = scmp.gt.s32.totalorder %s35, 0
    %s37 = scalar_select %p36, %s35, 0
    %p38 = scmp.lt.s32.totalorder %s37, 63
    %s39 = scalar_select %p38, %s37, 63
    %s40 = smul.addr %s39, 16
    %s41 = scalar_lea.hbm %s1, %s40
    // Predicated region
    $region14: #{cbow_forward.1} parent=1 // pred_check
      _
    $region15: #{cbow_forward.1} parent=1 // pred_check_branch
      %43 = sbr.rel target = $region17
    $region16: #{cbow_forward.1} parent=1 // pred_region
      %44 = sst [smem:[#allocation10]] [#allocation9]
      %45 = sst [smem:[#allocation11]] [#allocation8]
    $region17: #{cbow_forward.1} parent=1 // pred_fallthru
      _
    %47 = shalt.err (0)
    %s49 = sshll.u32 [#allocation2], 4
    %s50 = int_to_ptr.vmem [resolvable:$true] %s49
    %52 = dma.hbm_to_vmem [thread:$0]  %s41, 16, %s50, [#allocation3]
    %s53 = sld [smem:[#allocation5 + $0x1]]
    %p54 = scmp.gt.s32.totalorder %s53, 0
    %s55 = scalar_select %p54, %s53, 0
    %p56 = scmp.lt.s32.totalorder %s55, 63
    %s57 = scalar_select %p56, %s55, 63
    %s58 = smul.addr %s57, 16
    %s59 = scalar_lea.hbm %s1, %s58
    %s60 = scalar_lea.vmem [#allocation2], 1
    %s61 = scalar_lea.sflag [#allocation3], 1
    // Predicated region
    $region18: #{cbow_forward.1} parent=1 // pred_check
      _
    $region19: #{cbow_forward.1} parent=1 // pred_check_branch
      %63 = sbr.rel target = $region21
    $region20: #{cbow_forward.1} parent=1 // pred_region
      %64 = sst [smem:[#allocation10]] [#allocation13]
      %65 = sst [smem:[#allocation11]] [#allocation12]
    $region21: #{cbow_forward.1} parent=1 // pred_fallthru
      _
    %67 = shalt.err (0)
    %s69 = sshll.u32 %s60, 4
    %s70 = int_to_ptr.vmem [resolvable:$true] %s69
    %72 = dma.hbm_to_vmem [thread:$0]  %s59, 16, %s70, %s61
    %s73 = sld [smem:[#allocation5 + $0x2]]
    %p74 = scmp.gt.s32.totalorder %s73, 0
    %s75 = scalar_select %p74, %s73, 0
    %p76 = scmp.lt.s32.totalorder %s75, 63
    %s77 = scalar_select %p76, %s75, 63
    %s78 = smul.addr %s77, 16
    %s79 = scalar_lea.hbm %s1, %s78
    %s80 = scalar_lea.vmem [#allocation2], 2
    %s81 = scalar_lea.sflag [#allocation3], 2
    // Predicated region
    $region22: #{cbow_forward.1} parent=1 // pred_check
      _
    $region23: #{cbow_forward.1} parent=1 // pred_check_branch
      %83 = sbr.rel target = $region25
    $region24: #{cbow_forward.1} parent=1 // pred_region
      %84 = sst [smem:[#allocation10]] [#allocation15]
      %85 = sst [smem:[#allocation11]] [#allocation14]
    $region25: #{cbow_forward.1} parent=1 // pred_fallthru
      _
    %87 = shalt.err (0)
    %s89 = sshll.u32 %s80, 4
    %s90 = int_to_ptr.vmem [resolvable:$true] %s89
    %92 = dma.hbm_to_vmem [thread:$0]  %s79, 16, %s90, %s81
    %s93 = sld [smem:[#allocation5 + $0x3]]
    %p94 = scmp.gt.s32.totalorder %s93, 0
    %s95 = scalar_select %p94, %s93, 0
    %p96 = scmp.lt.s32.totalorder %s95, 63
    %s97 = scalar_select %p96, %s95, 63
    %s98 = smul.addr %s97, 16
    %s99 = scalar_lea.hbm %s1, %s98
    %s100 = scalar_lea.vmem [#allocation2], 3
    %s101 = scalar_lea.sflag [#allocation3], 3
    // Predicated region
    $region26: #{cbow_forward.1} parent=1 // pred_check
      _
    $region27: #{cbow_forward.1} parent=1 // pred_check_branch
      %103 = sbr.rel target = $region29
    $region28: #{cbow_forward.1} parent=1 // pred_region
      %104 = sst [smem:[#allocation10]] [#allocation17]
      %105 = sst [smem:[#allocation11]] [#allocation16]
    $region29: #{cbow_forward.1} parent=1 // pred_fallthru
      _
    %107 = shalt.err (0)
    %s109 = sshll.u32 %s100, 4
    %s110 = int_to_ptr.vmem [resolvable:$true] %s109
    %112 = dma.hbm_to_vmem [thread:$0]  %s99, 16, %s110, %s101
    %s113 = sld [smem:[#allocation5 + $0x4]]
    %p114 = scmp.gt.s32.totalorder %s113, 0
    %s115 = scalar_select %p114, %s113, 0
    %p116 = scmp.lt.s32.totalorder %s115, 63
    %s117 = scalar_select %p116, %s115, 63
    %s118 = smul.addr %s117, 16
    %s119 = scalar_lea.hbm %s1, %s118
    %s120 = scalar_lea.vmem [#allocation2], 4
    %s121 = scalar_lea.sflag [#allocation3], 4
    // Predicated region
    $region30: #{cbow_forward.1} parent=1 // pred_check
      _
    $region31: #{cbow_forward.1} parent=1 // pred_check_branch
      %123 = sbr.rel target = $region33
    $region32: #{cbow_forward.1} parent=1 // pred_region
      %124 = sst [smem:[#allocation10]] [#allocation19]
      %125 = sst [smem:[#allocation11]] [#allocation18]
    $region33: #{cbow_forward.1} parent=1 // pred_fallthru
      _
    %127 = shalt.err (0)
    %s129 = sshll.u32 %s120, 4
    %s130 = int_to_ptr.vmem [resolvable:$true] %s129
    %132 = dma.hbm_to_vmem [thread:$0]  %s119, 16, %s130, %s121
    %s133 = sld [smem:[#allocation5 + $0x5]]
    %p134 = scmp.gt.s32.totalorder %s133, 0
    %s135 = scalar_select %p134, %s133, 0
    %p136 = scmp.lt.s32.totalorder %s135, 63
    %s137 = scalar_select %p136, %s135, 63
    %s138 = smul.addr %s137, 16
    %s139 = scalar_lea.hbm %s1, %s138
    %s140 = scalar_lea.vmem [#allocation2], 5
    %s141 = scalar_lea.sflag [#allocation3], 5
    // Predicated region
    $region34: #{cbow_forward.1} parent=1 // pred_check
      _
    $region35: #{cbow_forward.1} parent=1 // pred_check_branch
      %143 = sbr.rel target = $region37
    $region36: #{cbow_forward.1} parent=1 // pred_region
      %144 = sst [smem:[#allocation10]] [#allocation21]
      %145 = sst [smem:[#allocation11]] [#allocation20]
    $region37: #{cbow_forward.1} parent=1 // pred_fallthru
      _
    %147 = shalt.err (0)
    %s149 = sshll.u32 %s140, 4
    %s150 = int_to_ptr.vmem [resolvable:$true] %s149
    %152 = dma.hbm_to_vmem [thread:$0]  %s139, 16, %s150, %s141
    %s153 = sld [smem:[#allocation5 + $0x6]]
    %p154 = scmp.gt.s32.totalorder %s153, 0
    %s155 = scalar_select %p154, %s153, 0
    %p156 = scmp.lt.s32.totalorder %s155, 63
    %s157 = scalar_select %p156, %s155, 63
    %s158 = smul.addr %s157, 16
    %s159 = scalar_lea.hbm %s1, %s158
    %s160 = scalar_lea.vmem [#allocation2], 6
    %s161 = scalar_lea.sflag [#allocation3], 6
    // Predicated region
    $region38: #{cbow_forward.1} parent=1 // pred_check
      _
    $region39: #{cbow_forward.1} parent=1 // pred_check_branch
      %163 = sbr.rel target = $region41
    $region40: #{cbow_forward.1} parent=1 // pred_region
      %164 = sst [smem:[#allocation10]] [#allocation23]
      %165 = sst [smem:[#allocation11]] [#allocation22]
    $region41: #{cbow_forward.1} parent=1 // pred_fallthru
      _
    %167 = shalt.err (0)
    %s169 = sshll.u32 %s160, 4
    %s170 = int_to_ptr.vmem [resolvable:$true] %s169
    %172 = dma.hbm_to_vmem [thread:$0]  %s159, 16, %s170, %s161
    %s173 = sld [smem:[#allocation5 + $0x7]]
    %p174 = scmp.gt.s32.totalorder %s173, 0
    %s175 = scalar_select %p174, %s173, 0
    %p176 = scmp.lt.s32.totalorder %s175, 63
    %s177 = scalar_select %p176, %s175, 63
    %s178 = smul.addr %s177, 16
    %s179 = scalar_lea.hbm %s1, %s178
    %s180 = scalar_lea.vmem [#allocation2], 7
    %s181 = scalar_lea.sflag [#allocation3], 7
    // Predicated region
    $region42: #{cbow_forward.1} parent=1 // pred_check
      _
    $region43: #{cbow_forward.1} parent=1 // pred_check_branch
      %183 = sbr.rel target = $region45
    $region44: #{cbow_forward.1} parent=1 // pred_region
      %184 = sst [smem:[#allocation10]] [#allocation25]
      %185 = sst [smem:[#allocation11]] [#allocation24]
    $region45: #{cbow_forward.1} parent=1 // pred_fallthru
      _
    %187 = shalt.err (0)
    %s189 = sshll.u32 %s180, 4
    %s190 = int_to_ptr.vmem [resolvable:$true] %s189
    %192 = dma.hbm_to_vmem [thread:$0]  %s179, 16, %s190, %s181
    %s193 = smul.u32 1, 1
    %s194 = sshll.u32 %s193, 4
    %195 = dma.done [#allocation3], %s194
    %s196 = sshll.u32 %s193, 4
    %197 = dma.done %s61, %s196
    %s198 = sshll.u32 %s193, 4
    %199 = dma.done %s81, %s198
    %s200 = sshll.u32 %s193, 4
    %201 = dma.done %s101, %s200
    %s202 = sshll.u32 %s193, 4
    %203 = dma.done %s121, %s202
    %s204 = sshll.u32 %s193, 4
    %205 = dma.done %s141, %s204
    %s206 = sshll.u32 %s193, 4
    %207 = dma.done %s161, %s206
    %s208 = sshll.u32 %s193, 4
    %209 = dma.done %s181, %s208
    %v210 = vld [vmem:[#allocation2] sm:$0xff]
    %v211 = vrot.slane %v210, 4
    %v212 = vadd.f32 %v210, %v211
    %v213 = vrot.slane %v212, 2
    %v214 = vadd.f32 %v212, %v213
    %v215 = vrot.slane %v214, 1
    %v216 = vadd.f32 %v214, %v215
    %v217 = vmul.f32 %v216, 0.125
    %v218 = vpack.c.bf16 %v217, %v217
    %v219 = vld [vmem:[#allocation6] sm:$0xf]
    %v220 = vld [vmem:[#allocation6 + $0x4] sm:$0xf]
    %v221 = vld [vmem:[#allocation6 + $0x8] sm:$0xf]
    %v222 = vld [vmem:[#allocation6 + $0xc] sm:$0xf]
    %v223 = vld [vmem:[#allocation6 + $0x10] sm:$0xf]
    %v224 = vld [vmem:[#allocation6 + $0x14] sm:$0xf]
    %v225 = vld [vmem:[#allocation6 + $0x18] sm:$0xf]
    %v226 = vld [vmem:[#allocation6 + $0x1c] sm:$0xf]
    %v227 = vld [vmem:[#allocation6 + $0x20] sm:$0xf]
    %v228 = vld [vmem:[#allocation6 + $0x24] sm:$0xf]
    %v229 = vld [vmem:[#allocation6 + $0x28] sm:$0xf]
    %v230 = vld [vmem:[#allocation6 + $0x2c] sm:$0xf]
    %v231 = vld [vmem:[#allocation6 + $0x30] sm:$0xf]
    %v232 = vld [vmem:[#allocation6 + $0x34] sm:$0xf]
    %v233 = vld [vmem:[#allocation6 + $0x38] sm:$0xf]
    %v234 = vld [vmem:[#allocation6 + $0x3c] sm:$0xf]
    %v235 = vld [vmem:[%s3] sm:$0x1]
    %v252 = vunpack.c.l.b16 %v219
    %v253 = vunpack.c.l.b16 %v220
    %v254 = vunpack.c.l.b16 %v221
    %v255 = vunpack.c.l.b16 %v222
    %v256 = vunpack.c.l.b16 %v223
    %v257 = vunpack.c.l.b16 %v224
    %v258 = vunpack.c.l.b16 %v225
    %v259 = vunpack.c.l.b16 %v226
    %v260 = vunpack.c.l.b16 %v227
    %v261 = vunpack.c.l.b16 %v228
    %v262 = vunpack.c.l.b16 %v229
    %v263 = vunpack.c.l.b16 %v230
    %v264 = vunpack.c.l.b16 %v231
    %v265 = vunpack.c.l.b16 %v232
    %v266 = vunpack.c.l.b16 %v233
    %v267 = vunpack.c.l.b16 %v234
    %v268 = vpack.c.b16 %v253, %v252
    %v269 = vpack.c.b16 %v255, %v254
    %v270 = vpack.c.b16 %v257, %v256
    %v271 = vpack.c.b16 %v259, %v258
    %v272 = vpack.c.b16 %v261, %v260
    %v273 = vpack.c.b16 %v263, %v262
    %v274 = vpack.c.b16 %v265, %v264
    %v275 = vpack.c.b16 %v267, %v266
    %284 = vmatprep.subr.bf16.mxu0 0
    %285 = vmatpush1.bf16.msra.mxu0 %v275
    %286 = vmatprep.subr.bf16.mxu0 0
    %287 = vmatpush1.bf16.msra.mxu0 %v274
    %288 = vmatprep.subr.bf16.mxu0 0
    %289 = vmatpush1.bf16.msra.mxu0 %v273
    %290 = vmatprep.subr.bf16.mxu0 0
    %291 = vmatpush1.bf16.msra.mxu0 %v272
    %292 = vmatprep.subr.bf16.mxu0 0
    %293 = vmatpush1.bf16.msra.mxu0 %v271
    %294 = vmatprep.subr.bf16.mxu0 0
    %295 = vmatpush1.bf16.msra.mxu0 %v270
    %296 = vmatprep.subr.bf16.mxu0 0
    %297 = vmatpush1.bf16.msra.mxu0 %v269
    %298 = vmatprep.subr.bf16.mxu0 0
    %299 = vmatpush1.bf16.msra.mxu0 %v268
    %300 = vmatprep.subr.bf16.mxu0 0
    %301 = vmatpush2.bf16.msra.mxu0 0
    %302 = vmatprep.subr.bf16.mxu0 0
    %303 = vmatpush2.bf16.msra.mxu0 0
    %304 = vmatprep.subr.bf16.mxu0 0
    %305 = vmatpush2.bf16.msra.mxu0 0
    %306 = vmatprep.subr.bf16.mxu0 0
    %307 = vmatpush2.bf16.msra.mxu0 0
    %308 = vmatprep.subr.bf16.mxu0 0
    %309 = vmatpush2.bf16.msra.mxu0 0
    %310 = vmatprep.subr.bf16.mxu0 0
    %311 = vmatpush2.bf16.msra.mxu0 0
    %312 = vmatprep.subr.bf16.mxu0 0
    %313 = vmatpush2.bf16.msra.mxu0 0
    %314 = vmatprep.subr.bf16.mxu0 0
    %315 = vmatpush2.bf16.msra.mxu0 0
    %316 = vmatprep.mubr.bf16.mxu0 0
    %317 = vmatmul.mubr.bf16.gmra.mxu0 %v218
    %v318 = vpop.f32.mrf.mxu0
    %v319 = vadd.f32 %v235, %v318
    %v320 = vpop.f32.mrf.mxu0
    %v321 = vpop.f32.mrf.mxu0
    %v322 = vpop.f32.mrf.mxu0
    %323 = vdwg.mxu0
    %324 = vst [vmem:[%s4] sm:$0x1] %v319
    %vm325 = vcmask 1040384
    %v326 = vsel %vm325, %v319, -inf
    %327 = vmax.xlane.f32.xlu0 %v326
    %v328 = vpop.xlane.xlu0 %327
    %v329 = vsub.f32 %v319, %v328
    %v330 = vmul.f32 %v329, 1.442695
    %v331 = vpow.pop %v330
    %v332 = vsel %vm325, %v331, 0.0
    %333 = vadd.xlane.f32.xlu0 %v332
    %v334 = vpop.xlane.xlu0 %333
    %335 = vst [vmem:[%s5] sm:$0x1] %v328
    %336 = vst [vmem:[%s6] sm:$0x1] %v334
    // Predicated region
    $region46: #{cbow_forward.1} parent=1 // pred_check
      _
    $region47: #{cbow_forward.1} parent=1 // pred_check_branch
      %338 = sbr.rel (0) target = $region49
    $region48: #{cbow_forward.1} parent=1 // pred_region
      _
    $region49: #{cbow_forward.1} parent=1 // pred_fallthru
      _
    // Predicated region
    $region50: #{cbow_forward.1} parent=1 // pred_check
      _
    $region51: #{cbow_forward.1} parent=1 // pred_check_branch
      %340 = sbr.rel (0) target = $region53
    $region52: #{cbow_forward.1} parent=1 // pred_region
      _
    $region53: #{cbow_forward.1} parent=1 // pred_fallthru
      _
    // Predicated region
    $region54: #{cbow_forward.1} parent=1 // pred_check
      _
    $region55: #{cbow_forward.1} parent=1 // pred_check_branch
      %342 = sbr.rel (0) target = $region57
    $region56: #{cbow_forward.1} parent=1 // pred_region
      _
    $region57: #{cbow_forward.1} parent=1 // pred_fallthru
      _
    // Predicated region
    $region58: #{cbow_forward.1} parent=1 // pred_check
      _
    $region59: #{cbow_forward.1} parent=1 // pred_check_branch
      %344 = sbr.rel (0) target = $region61
    $region60: #{cbow_forward.1} parent=1 // pred_region
      _
    $region61: #{cbow_forward.1} parent=1 // pred_fallthru
      _
    // Predicated region
    $region62: #{cbow_forward.1} parent=1 // pred_check
      _
    $region63: #{cbow_forward.1} parent=1 // pred_check_branch
      %346 = sbr.rel (0) target = $region65
    $region64: #{cbow_forward.1} parent=1 // pred_region
      _
    $region65: #{cbow_forward.1} parent=1 // pred_fallthru
      _
    // Predicated region
    $region66: #{cbow_forward.1} parent=1 // pred_check
      _
    $region67: #{cbow_forward.1} parent=1 // pred_check_branch
      %348 = sbr.rel (0) target = $region69
    $region68: #{cbow_forward.1} parent=1 // pred_region
      _
    $region69: #{cbow_forward.1} parent=1 // pred_fallthru
      _
    %349 = vsyncpa [#allocation7], 1
  %350 = vsyncmov [#allocation3]
  %s351 = vpop.sfrf %350
  %p352 = scmp.eq.s32.totalorder %s351, 0
  %p353 = pneg %p352
  %355 = shalt.err (%p353)
  %s356 = scalar_lea.sflag [#allocation3], 1
  %357 = vsyncmov %s356
  %s358 = vpop.sfrf %357
  %p359 = scmp.eq.s32.totalorder %s358, 0
  %p360 = pneg %p359
  %362 = shalt.err (%p360)
  %s363 = scalar_lea.sflag [#allocation3], 2
  %364 = vsyncmov %s363
  %s365 = vpop.sfrf %364
  %p366 = scmp.eq.s32.totalorder %s365, 0
  %p367 = pneg %p366
  %369 = shalt.err (%p367)
  %s370 = scalar_lea.sflag [#allocation3], 3
  %371 = vsyncmov %s370
  %s372 = vpop.sfrf %371
  %p373 = scmp.eq.s32.totalorder %s372, 0
  %p374 = pneg %p373
  %376 = shalt.err (%p374)
  %s377 = scalar_lea.sflag [#allocation3], 4
  %378 = vsyncmov %s377
  %s379 = vpop.sfrf %378
  %p380 = scmp.eq.s32.totalorder %s379, 0
  %p381 = pneg %p380
  %383 = shalt.err (%p381)
  %s384 = scalar_lea.sflag [#allocation3], 5
  %385 = vsyncmov %s384
  %s386 = vpop.sfrf %385
  %p387 = scmp.eq.s32.totalorder %s386, 0
  %p388 = pneg %p387
  %390 = shalt.err (%p388)
  %s391 = scalar_lea.sflag [#allocation3], 6
  %392 = vsyncmov %s391
  %s393 = vpop.sfrf %392
  %p394 = scmp.eq.s32.totalorder %s393, 0
  %p395 = pneg %p394
  %397 = shalt.err (%p395)
  %s398 = scalar_lea.sflag [#allocation3], 7
  %399 = vsyncmov %s398
  %s400 = vpop.sfrf %399
  %p401 = scmp.eq.s32.totalorder %s400, 0
  %p402 = pneg %p401
  %404 = shalt.err (%p402)

</llo_original>
